<compile_context>
chip_gen: v5e
topology: v5e:2x2
jax: 0.10.0
libtpu: 0.0.40
codegen_flags: <defaults>
</compile_context>

<pallas_src>
import jax
import jax.numpy as jnp
import numpy as np
from jax.experimental import pallas as pl
from jax.experimental.pallas import tpu as pltpu


def task_sampler_kernel(logits_ref, bits_ref, idx_ref, probs_ref):
    # logits_ref: (2N, 1) f32  -- rows [0:N) amplitude logits, [N:2N) phase logits
    # bits_ref:   (2N, S) i32  -- uniform integers in [0, 2^24)
    # idx_ref:    (2,  S) i32  -- row 0 amplitude idx, row 1 phase idx (samples on lanes)
    # probs_ref:  (1,  S) f32  -- task_probs (samples on lanes)
    two_n = logits_ref.shape[0]
    n = two_n // 2

    logits = logits_ref[...]                              # (2N, 1)
    bits = bits_ref[...]                                  # (2N, S)

    # uniforms strictly inside (0, 1), then Exp(1) race variables: one log/elem
    u = (bits.astype(jnp.float32) + 0.5) * (1.0 / 16777216.0)
    race = -jnp.log(u)                                    # (2N, S)

    def head(logit_col, race_blk):
        # logit_col: (N, 1), race_blk: (N, S); tasks on sublanes, samples on lanes
        lm = jnp.max(logit_col, axis=0, keepdims=True)    # (1, 1)
        e = jnp.exp(logit_col - lm)                       # (N, 1) shared: softmax + sampler
        p = e / jnp.sum(e, axis=0, keepdims=True)         # (N, 1) softmax(tau)
        # exponential race: argmin_i race_i / e_i  ~  Categorical(p)
        keyed = race_blk * (1.0 / e)                      # (N, S)
        mn = jnp.min(keyed, axis=0, keepdims=True)        # (1, S)
        ti = jax.lax.broadcasted_iota(jnp.int32, keyed.shape, 0)
        idx = jnp.min(jnp.where(keyed <= mn, ti, n),
                      axis=0, keepdims=True)              # (1, S) first-min index
        gathered = jnp.sum(jnp.where(ti == idx, p, 0.0),
                           axis=0, keepdims=True)         # (1, S) = p[idx]
        return idx, gathered

    amp_idx, amp_p = head(logits[:n], race[:n])
    ph_idx, ph_p = head(logits[n:], race[n:])

    idx_ref[0:1, :] = amp_idx
    idx_ref[1:2, :] = ph_idx
    probs_ref[...] = amp_p * ph_p


def _round_up(x, m):
    return ((x + m - 1) // m) * m


def task_sampler_forward(tau_amplitude, tau_phase, n_samples, key):
    """JAX wrapper reproducing TaskSampler.forward(n_samples).

    `key` must be a fresh jax.random key per invocation (new samples each call).
    """
    n_tasks = tau_amplitude.shape[0]

    # samples on the lane axis, padded to a multiple of 128; tile for large S
    s_lane = _round_up(max(int(n_samples), 1), 128)
    s_tile = min(s_lane, 8192)                       # well under scoped VMEM on v5e/v6e/v7x
    s_pad = _round_up(s_lane, s_tile)
    grid = (s_pad // s_tile,)

    # both distributions stacked on the sublane axis: (2N, 1)
    logits = jnp.concatenate(
        [tau_amplitude.astype(jnp.float32), tau_phase.astype(jnp.float32)]
    ).reshape(2 * n_tasks, 1)

    # top-24 random bits, drawn host-side with jax.random (pltpu PRNG has no
    # interpret lowering); values lie in [0, 2^24) so the in-kernel uniform is
    # strictly inside (0, 1).
    raw = jax.random.bits(key, (2 * n_tasks, s_pad), dtype=jnp.uint32)
    bits24 = jax.lax.shift_right_logical(raw, jnp.uint32(8)).astype(jnp.int32)

    idx, probs = pl.pallas_call(
        task_sampler_kernel,
        out_shape=(
            jax.ShapeDtypeStruct((2, s_pad), jnp.int32),
            jax.ShapeDtypeStruct((1, s_pad), jnp.float32),
        ),
        grid=grid,
        in_specs=[
            pl.BlockSpec((2 * n_tasks, 1), lambda i: (0, 0)),        # logits (replicated)
            pl.BlockSpec((2 * n_tasks, s_tile), lambda i: (0, i)),   # random bits
        ],
        out_specs=(
            pl.BlockSpec((2, s_tile), lambda i: (0, i)),             # indices slab
            pl.BlockSpec((1, s_tile), lambda i: (0, i)),             # probs row
        ),
        compiler_params=pltpu.CompilerParams(
            dimension_semantics=("parallel",)),                      # shards tiles on v7x's 2 TCs
    )(logits, bits24)

    amplitude_idxs = idx[0, :n_samples]
    phase_idxs = idx[1, :n_samples]
    task_probs = probs[0, :n_samples]
    return (amplitude_idxs, phase_idxs), task_probs


if __name__ == "__main__":
    n_tasks = 8        # number of training tasks (parameter vector length)
    n_samples = 8      # forward(n_samples) argument: number of samples drawn

    # Deterministic parameter init, matching nn.Parameter(torch.full((n_tasks,), 1/n_tasks))
    # plus a small deterministic perturbation so the softmax is non-trivial.
    key = jax.random.PRNGKey(0)
    k1, k2, k_sample = jax.random.split(key, 3)
    tau_amplitude = jnp.full((n_tasks,), 1.0 / n_tasks, dtype=jnp.float32) \
        + 0.1 * jax.random.normal(k1, (n_tasks,), dtype=jnp.float32)
    tau_phase = jnp.full((n_tasks,), 1.0 / n_tasks, dtype=jnp.float32) \
        + 0.1 * jax.random.normal(k2, (n_tasks,), dtype=jnp.float32)

    (amp_idxs, phase_idxs), task_probs = task_sampler_forward(
        tau_amplitude, tau_phase, n_samples, key=k_sample)
    jax.block_until_ready(task_probs)

    # Sanity check: probs must equal softmax(tau)[idx] products for the sampled indices.
    p_amp = np.asarray(jax.nn.softmax(tau_amplitude, axis=0))
    p_ph = np.asarray(jax.nn.softmax(tau_phase, axis=0))
    ai = np.asarray(amp_idxs)
    pi = np.asarray(phase_idxs)
    assert ai.shape == (n_samples,) and pi.shape == (n_samples,)
    assert ((ai >= 0) & (ai < n_tasks)).all() and ((pi >= 0) & (pi < n_tasks)).all()
    np.testing.assert_allclose(np.asarray(task_probs), p_amp[ai] * p_ph[pi],
                               rtol=1e-5, atol=1e-6)

    print("KERNEL_OK")
</pallas_src>

<mosaic_0001>
module attributes {stable_mosaic.version = 11 : i64} {
  func.func @task_sampler_kernel(%arg0: i32, %arg1: memref<16x1xf32, #tpu.memory_space<vmem>>, %arg2: memref<16x128xi32, #tpu.memory_space<vmem>>, %arg3: memref<2x128xi32, #tpu.memory_space<vmem>>, %arg4: memref<1x128xf32, #tpu.memory_space<vmem>>) attributes {dimension_semantics = [#tpu.dimension_semantics<parallel>], iteration_bounds = array<i64: 1>, scalar_prefetch = 0 : i64, scratch_operands = 0 : i64, tpu.core_type = #tpu.core_type<tc>, window_params = [{pipeline_mode = #tpu.pipeline_mode<synchronous>, transform_indices = @transform_0, window_bounds = array<i64: 16, 1>}, {transform_indices = @transform_1, window_bounds = array<i64: 16, 128>}, {transform_indices = @transform_2, window_bounds = array<i64: 2, 128>}, {transform_indices = @transform_3, window_bounds = array<i64: 1, 128>}]} {
    %c0 = arith.constant 0 : index
    %c0_0 = arith.constant 0 : index
    %0 = vector.load %arg1[%c0, %c0_0] : memref<16x1xf32, #tpu.memory_space<vmem>>, vector<16x1xf32>
    %c0_1 = arith.constant 0 : index
    %c0_2 = arith.constant 0 : index
    %1 = vector.load %arg2[%c0_1, %c0_2] : memref<16x128xi32, #tpu.memory_space<vmem>>, vector<16x128xi32>
    %2 = arith.sitofp %1 : vector<16x128xi32> to vector<16x128xf32>
    %cst = arith.constant 5.000000e-01 : f32
    %3 = vector.broadcast %cst : f32 to vector<16x128xf32>
    %4 = arith.addf %2, %3 : vector<16x128xf32>
    %cst_3 = arith.constant 5.96046448E-8 : f32
    %5 = vector.broadcast %cst_3 : f32 to vector<16x128xf32>
    %6 = arith.mulf %4, %5 : vector<16x128xf32>
    %7 = math.log %6 : vector<16x128xf32>
    %cst_4 = arith.constant 0.000000e+00 : f32
    %8 = vector.broadcast %cst_4 : f32 to vector<16x128xf32>
    %9 = arith.subf %8, %7 : vector<16x128xf32>
    %10 = vector.extract_strided_slice %0 {offsets = [0, 0], sizes = [8, 1], strides = [1, 1]} : vector<16x1xf32> to vector<8x1xf32>
    %11 = vector.extract_strided_slice %9 {offsets = [0, 0], sizes = [8, 128], strides = [1, 1]} : vector<16x128xf32> to vector<8x128xf32>
    %cst_5 = arith.constant dense<0xFF800000> : vector<1xf32>
    %12 = vector.multi_reduction <maximumf>, %10, %cst_5 [0] : vector<8x1xf32> to vector<1xf32>
    %13 = vector.shape_cast %12 : vector<1xf32> to vector<1x1xf32>
    %14 = vector.broadcast %13 : vector<1x1xf32> to vector<8x1xf32>
    %15 = arith.subf %10, %14 : vector<8x1xf32>
    %16 = math.exp %15 : vector<8x1xf32>
    %cst_6 = arith.constant dense<0.000000e+00> : vector<1xf32>
    %17 = vector.multi_reduction <add>, %16, %cst_6 [0] : vector<8x1xf32> to vector<1xf32>
    %18 = vector.shape_cast %17 : vector<1xf32> to vector<1x1xf32>
    %19 = vector.broadcast %18 : vector<1x1xf32> to vector<8x1xf32>
    %20 = arith.divf %16, %19 : vector<8x1xf32>
    %cst_7 = arith.constant 1.000000e+00 : f32
    %21 = vector.broadcast %cst_7 : f32 to vector<8x1xf32>
    %22 = arith.divf %21, %16 : vector<8x1xf32>
    %23 = vector.broadcast %22 : vector<8x1xf32> to vector<8x128xf32>
    %24 = arith.mulf %11, %23 : vector<8x128xf32>
    %cst_8 = arith.constant dense<0x7F800000> : vector<128xf32>
    %25 = vector.multi_reduction <minimumf>, %24, %cst_8 [0] : vector<8x128xf32> to vector<128xf32>
    %26 = vector.shape_cast %25 : vector<128xf32> to vector<1x128xf32>
    %27 = tpu.iota {dimensions = array<i32: 0>} : vector<8x128xi32>
    %28 = vector.broadcast %26 : vector<1x128xf32> to vector<8x128xf32>
    %29 = arith.cmpf ole, %24, %28 : vector<8x128xf32>
    %c8_i32 = arith.constant 8 : i32
    %30 = vector.broadcast %c8_i32 : i32 to vector<8x128xi32>
    %31 = arith.select %29, %27, %30 : vector<8x128xi1>, vector<8x128xi32>
    %cst_9 = arith.constant dense<2147483647> : vector<128xi32>
    %32 = vector.multi_reduction <minsi>, %31, %cst_9 [0] : vector<8x128xi32> to vector<128xi32>
    %33 = vector.shape_cast %32 : vector<128xi32> to vector<1x128xi32>
    %34 = vector.broadcast %33 : vector<1x128xi32> to vector<8x128xi32>
    %35 = arith.cmpi eq, %27, %34 : vector<8x128xi32>
    %cst_10 = arith.constant 0.000000e+00 : f32
    %36 = vector.shape_cast %20 : vector<8x1xf32> to vector<8x1xf32>
    %37 = vector.broadcast %36 : vector<8x1xf32> to vector<8x128xf32>
    %38 = vector.broadcast %cst_10 : f32 to vector<8x128xf32>
    %39 = arith.select %35, %37, %38 : vector<8x128xi1>, vector<8x128xf32>
    %cst_11 = arith.constant dense<0.000000e+00> : vector<128xf32>
    %40 = vector.multi_reduction <add>, %39, %cst_11 [0] : vector<8x128xf32> to vector<128xf32>
    %41 = vector.shape_cast %40 : vector<128xf32> to vector<1x128xf32>
    %42 = vector.extract_strided_slice %0 {offsets = [8, 0], sizes = [8, 1], strides = [1, 1]} : vector<16x1xf32> to vector<8x1xf32>
    %43 = vector.extract_strided_slice %9 {offsets = [8, 0], sizes = [8, 128], strides = [1, 1]} : vector<16x128xf32> to vector<8x128xf32>
    %cst_12 = arith.constant dense<0xFF800000> : vector<1xf32>
    %44 = vector.multi_reduction <maximumf>, %42, %cst_12 [0] : vector<8x1xf32> to vector<1xf32>
    %45 = vector.shape_cast %44 : vector<1xf32> to vector<1x1xf32>
    %46 = vector.broadcast %45 : vector<1x1xf32> to vector<8x1xf32>
    %47 = arith.subf %42, %46 : vector<8x1xf32>
    %48 = math.exp %47 : vector<8x1xf32>
    %cst_13 = arith.constant dense<0.000000e+00> : vector<1xf32>
    %49 = vector.multi_reduction <add>, %48, %cst_13 [0] : vector<8x1xf32> to vector<1xf32>
    %50 = vector.shape_cast %49 : vector<1xf32> to vector<1x1xf32>
    %51 = vector.broadcast %50 : vector<1x1xf32> to vector<8x1xf32>
    %52 = arith.divf %48, %51 : vector<8x1xf32>
    %cst_14 = arith.constant 1.000000e+00 : f32
    %53 = vector.broadcast %cst_14 : f32 to vector<8x1xf32>
    %54 = arith.divf %53, %48 : vector<8x1xf32>
    %55 = vector.broadcast %54 : vector<8x1xf32> to vector<8x128xf32>
    %56 = arith.mulf %43, %55 : vector<8x128xf32>
    %cst_15 = arith.constant dense<0x7F800000> : vector<128xf32>
    %57 = vector.multi_reduction <minimumf>, %56, %cst_15 [0] : vector<8x128xf32> to vector<128xf32>
    %58 = vector.shape_cast %57 : vector<128xf32> to vector<1x128xf32>
    %59 = tpu.iota {dimensions = array<i32: 0>} : vector<8x128xi32>
    %60 = vector.broadcast %58 : vector<1x128xf32> to vector<8x128xf32>
    %61 = arith.cmpf ole, %56, %60 : vector<8x128xf32>
    %c8_i32_16 = arith.constant 8 : i32
    %62 = vector.broadcast %c8_i32_16 : i32 to vector<8x128xi32>
    %63 = arith.select %61, %59, %62 : vector<8x128xi1>, vector<8x128xi32>
    %cst_17 = arith.constant dense<2147483647> : vector<128xi32>
    %64 = vector.multi_reduction <minsi>, %63, %cst_17 [0] : vector<8x128xi32> to vector<128xi32>
    %65 = vector.shape_cast %64 : vector<128xi32> to vector<1x128xi32>
    %66 = vector.broadcast %65 : vector<1x128xi32> to vector<8x128xi32>
    %67 = arith.cmpi eq, %59, %66 : vector<8x128xi32>
    %cst_18 = arith.constant 0.000000e+00 : f32
    %68 = vector.shape_cast %52 : vector<8x1xf32> to vector<8x1xf32>
    %69 = vector.broadcast %68 : vector<8x1xf32> to vector<8x128xf32>
    %70 = vector.broadcast %cst_18 : f32 to vector<8x128xf32>
    %71 = arith.select %67, %69, %70 : vector<8x128xi1>, vector<8x128xf32>
    %cst_19 = arith.constant dense<0.000000e+00> : vector<128xf32>
    %72 = vector.multi_reduction <add>, %71, %cst_19 [0] : vector<8x128xf32> to vector<128xf32>
    %73 = vector.shape_cast %72 : vector<128xf32> to vector<1x128xf32>
    %c0_20 = arith.constant 0 : index
    %c0_21 = arith.constant 0 : index
    %74 = vector.load %arg3[%c0_20, %c0_21] : memref<2x128xi32, #tpu.memory_space<vmem>>, vector<1x128xi32>
    tpu.vector_store %arg3[%c0_20, %c0_21], %33 {strides = array<i32>} : memref<2x128xi32, #tpu.memory_space<vmem>>, vector<1x128xi32>,
    %c1 = arith.constant 1 : index
    %c0_22 = arith.constant 0 : index
    %75 = vector.load %arg3[%c1, %c0_22] : memref<2x128xi32, #tpu.memory_space<vmem>>, vector<1x128xi32>
    tpu.vector_store %arg3[%c1, %c0_22], %65 {strides = array<i32>} : memref<2x128xi32, #tpu.memory_space<vmem>>, vector<1x128xi32>,
    %76 = arith.mulf %41, %73 : vector<1x128xf32>
    %c0_23 = arith.constant 0 : index
    %c0_24 = arith.constant 0 : index
    %77 = vector.load %arg4[%c0_23, %c0_24] : memref<1x128xf32, #tpu.memory_space<vmem>>, vector<1x128xf32>
    tpu.vector_store %arg4[%c0_23, %c0_24], %76 {strides = array<i32>} : memref<1x128xf32, #tpu.memory_space<vmem>>, vector<1x128xf32>,
    return
  }
  func.func @transform_0(%arg0: i32) -> (i32, i32) {
    %c0_i32 = arith.constant 0 : i32
    %c0_i32_0 = arith.constant 0 : i32
    %c0_i32_1 = arith.constant 0 : i32
    return %c0_i32, %c0_i32_0 : i32, i32
  }
  func.func @transform_1(%arg0: i32) -> (i32, i32) {
    %c0_i32 = arith.constant 0 : i32
    %c0_i32_0 = arith.constant 0 : i32
    return %c0_i32, %arg0 : i32, i32
  }
  func.func @transform_2(%arg0: i32) -> (i32, i32) {
    %c0_i32 = arith.constant 0 : i32
    %c0_i32_0 = arith.constant 0 : i32
    return %c0_i32, %arg0 : i32, i32
  }
  func.func @transform_3(%arg0: i32) -> (i32, i32) {
    %c0_i32 = arith.constant 0 : i32
    %c0_i32_0 = arith.constant 0 : i32
    return %c0_i32, %arg0 : i32, i32
  }
}

</mosaic_0001>

<llo_original>
// kernel: tpu_custom_call.1
$region0: #{tpu_custom_call.1}
  #allocation0 [shape = 'u32[]', space=smem, size = 0x4, offset = 0x4, fixed_abs, tag = 'smem constant byte address 0x4 - core index']
  #allocation1 [shape = 'u32[72,128]{1,0:T(1,128)}', space=vmem, size = 0x9000, scoped, tag = 'internal scratch']
  %s0 = inlined_call_operand.vmem [shape: f32[16,1], index: 0, kind: input, shape index: {}]
  %s1 = inlined_call_operand.vmem [shape: s32[16,128], index: 1, kind: input, shape index: {}]
  %s2 = inlined_call_operand.hbm [shape: s32[2,128], index: 2, kind: output, shape index: {0}]
  %s3 = inlined_call_operand.hbm [shape: f32[1,128], index: 3, kind: output, shape index: {1}]
  %4 = xla_tuple %s2, %s3
  %s5 = sld [smem:[#allocation0]]
  $region26: #{tpu_custom_call.1} parent=0
    _
  %s7 = ssub.s32 1, %s5
  %s8 = scalar_select 0, %s7, %s5
  $region1: #{tpu_custom_call.1} parent=0
    #allocation2 [shape = 'u8[1024]{0}', space=vmem, size = 0x400, scoped, tag = 'output window, operand 0, single buffered']
    #allocation3 [shape = 's32[1]{0}', space=sflag, size = 0x4, scoped, tag = 'scoped memory for tpu_custom_call.1']
    #allocation4 [shape = 'u8[512]{0}', space=vmem, size = 0x400, scoped, tag = 'output window, operand 1, single buffered']
    #allocation5 [shape = 's32[1]{0}', space=sflag, size = 0x4, scoped, tag = 'scoped memory for tpu_custom_call.1']
    %9 = vsyncpa [#allocation3], 0
    %10 = vsyncpa [#allocation5], 0
    // Predicated region
    $region2: #{tpu_custom_call.1} parent=1 // pred_check
      _
    $region3: #{tpu_custom_call.1} parent=1 // pred_check_branch
      %12 = sbr.rel (0) target = $region5
    $region4: #{tpu_custom_call.1} parent=1 // pred_region
      _
    $region5: #{tpu_custom_call.1} parent=1 // pred_fallthru
      _
    // Predicated region
    $region6: #{tpu_custom_call.1} parent=1 // pred_check
      _
    $region7: #{tpu_custom_call.1} parent=1 // pred_check_branch
      %14 = sbr.rel (0) target = $region9
    $region8: #{tpu_custom_call.1} parent=1 // pred_region
      _
    $region9: #{tpu_custom_call.1} parent=1 // pred_fallthru
      _
    %v15 = vld [vmem:[%s0] sm:$0xff]
    %v16 = vld [vmem:[%s0 + $0x8] sm:$0xff]
    %v17 = vld [vmem:[%s1] sm:$0xff]
    %v18 = vld [vmem:[%s1 + $0x8] sm:$0xff]
    %v19 = vcvt.s32.f32 %v17
    %v20 = vcvt.s32.f32 %v18
    %v21 = vadd.f32 %v19, 0.5
    %v22 = vadd.f32 %v20, 0.5
    %v23 = vmul.f32 %v21, 5.9604645e-08
    %v24 = vmul.f32 %v22, 5.9604645e-08
    %v25 = vlog2.pop %v23
    %v26 = vmul.f32 %v25, 0.6931472
    %v27 = vlog2.pop %v24
    %v28 = vmul.f32 %v27, 0.6931472
    %v29 = vsub.f32 0.0, %v26
    %v30 = vsub.f32 0.0, %v28
    %vm31 = vcmask 7168
    %v32 = vsel %vm31, %v15, -inf
    %v33 = vrot.slane %v32, 4
    %v34 = vmax.f32 %v32, %v33
    %v35 = vrot.slane %v34, 2
    %v36 = vmax.f32 %v34, %v35
    %v37 = vrot.slane %v36, 1
    %v38 = vmax.f32 %v36, %v37
    %v39 = vsub.f32 %v15, %v38
    %v40 = vmul.f32 %v39, 1.442695
    %v41 = vpow.pop %v40
    %v42 = vsel %vm31, %v41, 0.0
    %v43 = vrot.slane %v42, 4
    %v44 = vadd.f32 %v42, %v43
    %v45 = vrot.slane %v44, 2
    %v46 = vadd.f32 %v44, %v45
    %v47 = vrot.slane %v46, 1
    %v48 = vadd.f32 %v46, %v47
    %v49 = vrcp.pop %v48
    %v50 = vmul.f32 %v48, %v49
    %v51 = vsub.f32 1.0, %v50
    %v52 = vmul.f32 %v49, %v51
    %v53 = vadd.f32 %v49, %v52
    %vm54 = vweird.f32 %v48
    %vm55 = vweird.f32 %v49
    %vm56 = vmor %vm54, %vm55
    %v57 = vsel %vm56, %v49, %v53
    %v58 = vand.u32 2147483647, %v48
    %vm59 = vcmp.eq.f32.partialorder %v58, 8.507059e+37
    %v60 = vand.u32 %v48, 2147483648
    %v61 = vor.u32 1.1754944e-38, %v60
    %v62 = vsel %vm59, %v61, %v57
    %v63 = vmul.f32 %v41, %v62
    %v64 = vrcp.pop %v41
    %v65 = vmul.f32 %v41, %v64
    %v66 = vsub.f32 1.0, %v65
    %v67 = vmul.f32 %v64, %v66
    %v68 = vadd.f32 %v64, %v67
    %vm69 = vweird.f32 %v41
    %vm70 = vweird.f32 %v64
    %vm71 = vmor %vm69, %vm70
    %v72 = vsel %vm71, %v64, %v68
    %v73 = vand.u32 2147483647, %v41
    %vm74 = vcmp.eq.f32.partialorder %v73, 8.507059e+37
    %v75 = vand.u32 %v41, 2147483648
    %v76 = vor.u32 1.1754944e-38, %v75
    %v77 = vsel %vm74, %v76, %v72
    %v78 = vmul.f32 1.0, %v77
    %80 = vset.pattern.permute.xlu0 0
    %81 = vperm.xlu0 %80, %v78
    %v82 = vpop.permute.xlu0 %81
    %v84 = vmul.f32 %v29, %v82
    %v85 = vrot.slane %v84, 4
    %v86 = vmin.f32 %v84, %v85
    %v87 = vrot.slane %v86, 2
    %v88 = vmin.f32 %v86, %v87
    %v89 = vrot.slane %v88, 1
    %v90 = vmin.f32 %v88, %v89
    %v91 = vlaneseq
    %v92 = vshrl.u32 %v91, 7
    %vm93 = vcmp.le.f32.partialorder %v84, %v90
    %v94 = vsel %vm93, %v92, 8
    %v95 = vrot.slane %v94, 4
    %vm96 = vcmp.lt.s32.totalorder %v94, %v95
    %v97 = vsel %vm96, %v94, %v95
    %v98 = vrot.slane %v97, 2
    %vm99 = vcmp.lt.s32.totalorder %v97, %v98
    %v100 = vsel %vm99, %v97, %v98
    %v101 = vrot.slane %v100, 1
    %vm102 = vcmp.lt.s32.totalorder %v100, %v101
    %v103 = vsel %vm102, %v100, %v101
    %vm104 = vcmp.eq.s32.totalorder %v92, %v103
    %106 = vset.pattern.permute.xlu0 0
    %107 = vperm.xlu0 %106, %v63
    %v108 = vpop.permute.xlu0 %107
    %v110 = vsel %vm104, %v108, 0.0
    %v111 = vrot.slane %v110, 4
    %v112 = vadd.f32 %v110, %v111
    %v113 = vrot.slane %v112, 2
    %v114 = vadd.f32 %v112, %v113
    %v115 = vrot.slane %v114, 1
    %v116 = vadd.f32 %v114, %v115
    %v117 = vsel %vm31, %v16, -inf
    %v118 = vrot.slane %v117, 4
    %v119 = vmax.f32 %v117, %v118
    %v120 = vrot.slane %v119, 2
    %v121 = vmax.f32 %v119, %v120
    %v122 = vrot.slane %v121, 1
    %v123 = vmax.f32 %v121, %v122
    %v124 = vsub.f32 %v16, %v123
    %v125 = vmul.f32 %v124, 1.442695
    %v126 = vpow.pop %v125
    %v127 = vsel %vm31, %v126, 0.0
    %v128 = vrot.slane %v127, 4
    %v129 = vadd.f32 %v127, %v128
    %v130 = vrot.slane %v129, 2
    %v131 = vadd.f32 %v129, %v130
    %v132 = vrot.slane %v131, 1
    %v133 = vadd.f32 %v131, %v132
    %v134 = vrcp.pop %v133
    %v135 = vmul.f32 %v133, %v134
    %v136 = vsub.f32 1.0, %v135
    %v137 = vmul.f32 %v134, %v136
    %v138 = vadd.f32 %v134, %v137
    %vm139 = vweird.f32 %v133
    %vm140 = vweird.f32 %v134
    %vm141 = vmor %vm139, %vm140
    %v142 = vsel %vm141, %v134, %v138
    %v143 = vand.u32 2147483647, %v133
    %vm144 = vcmp.eq.f32.partialorder %v143, 8.507059e+37
    %v145 = vand.u32 %v133, 2147483648
    %v146 = vor.u32 1.1754944e-38, %v145
    %v147 = vsel %vm144, %v146, %v142
    %v148 = vmul.f32 %v126, %v147
    %v149 = vrcp.pop %v126
    %v150 = vmul.f32 %v126, %v149
    %v151 = vsub.f32 1.0, %v150
    %v152 = vmul.f32 %v149, %v151
    %v153 = vadd.f32 %v149, %v152
    %vm154 = vweird.f32 %v126
    %vm155 = vweird.f32 %v149
    %vm156 = vmor %vm154, %vm155
    %v157 = vsel %vm156, %v149, %v153
    %v158 = vand.u32 2147483647, %v126
    %vm159 = vcmp.eq.f32.partialorder %v158, 8.507059e+37
    %v160 = vand.u32 %v126, 2147483648
    %v161 = vor.u32 1.1754944e-38, %v160
    %v162 = vsel %vm159, %v161, %v157
    %v163 = vmul.f32 1.0, %v162
    %165 = vset.pattern.permute.xlu0 0
    %166 = vperm.xlu0 %165, %v163
    %v167 = vpop.permute.xlu0 %166
    %v169 = vmul.f32 %v30, %v167
    %v170 = vrot.slane %v169, 4
    %v171 = vmin.f32 %v169, %v170
    %v172 = vrot.slane %v171, 2
    %v173 = vmin.f32 %v171, %v172
    %v174 = vrot.slane %v173, 1
    %v175 = vmin.f32 %v173, %v174
    %vm176 = vcmp.le.f32.partialorder %v169, %v175
    %v177 = vsel %vm176, %v92, 8
    %v178 = vrot.slane %v177, 4
    %vm179 = vcmp.lt.s32.totalorder %v177, %v178
    %v180 = vsel %vm179, %v177, %v178
    %v181 = vrot.slane %v180, 2
    %vm182 = vcmp.lt.s32.totalorder %v180, %v181
    %v183 = vsel %vm182, %v180, %v181
    %v184 = vrot.slane %v183, 1
    %vm185 = vcmp.lt.s32.totalorder %v183, %v184
    %v186 = vsel %vm185, %v183, %v184
    %vm187 = vcmp.eq.s32.totalorder %v92, %v186
    %189 = vset.pattern.permute.xlu0 0
    %190 = vperm.xlu0 %189, %v148
    %v191 = vpop.permute.xlu0 %190
    %v193 = vsel %vm187, %v191, 0.0
    %v194 = vrot.slane %v193, 4
    %v195 = vadd.f32 %v193, %v194
    %v196 = vrot.slane %v195, 2
    %v197 = vadd.f32 %v195, %v196
    %v198 = vrot.slane %v197, 1
    %v199 = vadd.f32 %v197, %v198
    %200 = vst [vmem:[#allocation2] sm:$0x1] %v103
    %201 = vst [vmem:[#allocation2 + $0x1] sm:$0x1] %v186
    %v202 = vmul.f32 %v116, %v199
    %203 = vst [vmem:[#allocation4] sm:$0x1] %v202
    // Predicated region
    $region10: #{tpu_custom_call.1} parent=1 // pred_check
      _
    $region11: #{tpu_custom_call.1} parent=1 // pred_check_branch
      %205 = sbr.rel (0) target = $region13
    $region12: #{tpu_custom_call.1} parent=1 // pred_region
      %207 = vsyncadd [#allocation3], 0
      %s209 = sshll.u32 [#allocation2], 4
      %s210 = int_to_ptr.vmem [resolvable:$true] %s209
      %s211 = sshll.u32 %s2, 4
      %s212 = int_to_ptr.hbm [resolvable:$true] %s211
      %214 = dma.vmem_to_hbm [thread:$0]  %s210, 32, %s212, [#allocation3]
    $region13: #{tpu_custom_call.1} parent=1 // pred_fallthru
      _
    // Predicated region
    $region14: #{tpu_custom_call.1} parent=1 // pred_check
      _
    $region15: #{tpu_custom_call.1} parent=1 // pred_check_branch
      %216 = sbr.rel (0) target = $region17
    $region16: #{tpu_custom_call.1} parent=1 // pred_region
      %218 = vsyncadd [#allocation5], 0
      %s220 = sshll.u32 [#allocation4], 4
      %s221 = int_to_ptr.vmem [resolvable:$true] %s220
      %s222 = sshll.u32 %s3, 4
      %s223 = int_to_ptr.hbm [resolvable:$true] %s222
      %225 = dma.vmem_to_hbm [thread:$0]  %s221, 16, %s223, [#allocation5]
    $region17: #{tpu_custom_call.1} parent=1 // pred_fallthru
      _
    // Predicated region
    $region18: #{tpu_custom_call.1} parent=1 // pred_check
      _
    $region19: #{tpu_custom_call.1} parent=1 // pred_check_branch
      %227 = sbr.rel (0) target = $region21
    $region20: #{tpu_custom_call.1} parent=1 // pred_region
      %229 = dma.done [#allocation3], 32
    $region21: #{tpu_custom_call.1} parent=1 // pred_fallthru
      _
    // Predicated region
    $region22: #{tpu_custom_call.1} parent=1 // pred_check
      _
    $region23: #{tpu_custom_call.1} parent=1 // pred_check_branch
      %231 = sbr.rel (0) target = $region25
    $region24: #{tpu_custom_call.1} parent=1 // pred_region
      %233 = dma.done [#allocation5], 16
    $region25: #{tpu_custom_call.1} parent=1 // pred_fallthru
      _
    %234 = vsyncpa [#allocation3], 1
    %235 = vsyncpa [#allocation5], 1

</llo_original>
